<compile_context>
chip_gen: v7x
topology: tpu7x:2x2x1
jax: 0.10.0
libtpu: 0.0.40
codegen_flags: <defaults>
</compile_context>

<pallas_src>
from functools import partial

import numpy as np
import jax
import jax.numpy as jnp
from jax.experimental import pallas as pl
from jax.experimental.pallas import tpu as pltpu


def spatial_encoding_kernel(table_ref, dist_ref, out_ref, *, clamp_max, num_heads):
    """Clamp distances and gather per-head biases as lane-dense planes.

    table_ref : (L*H,)     f32 SMEM -- flattened embedding table, entry l*H + h
    dist_ref  : (TN, N)    i32 VMEM -- row-block of the shortest-distance matrix
    out_ref   : (H, TN, N) VMEM     -- per-head bias planes (lane-dense, f32/bf16)
    """
    # Negative / "unreachable" sentinel distances clamp to index 0, exactly like
    # torch.clamp(min=0) in the reference module.
    d = jnp.clip(dist_ref[...], 0, clamp_max)                      # (TN, N) int32

    # Hoist the table scalar loads (cheap SMEM sld) out of both loops.
    tvals = [table_ref[i] for i in range((clamp_max + 1) * num_heads)]

    # Hoist the `d == l` compares out of the head loop: computed ONCE per tile
    # and reused by every head's select chain.  Head loop stays outermost so
    # only one output plane is live at a time.
    # TODO(synk): for clamp_max + 1 > ~32 (or very large L*H) replace the fully
    # unrolled chain with an l-major lax.fori_loop over table chunks or a
    # one-hot MXU gather to bound compile time / vreg pressure.
    masks = [d == l for l in range(1, clamp_max + 1)]

    for h in range(num_heads):
        plane = jnp.full(d.shape, tvals[h], dtype=jnp.float32)     # l == 0 default
        for l in range(1, clamp_max + 1):
            # Scalar operand -> a single splat vreg per select; each (h, l)
            # table value is used exactly once, so there is nothing redundant
            # left to CSE/hoist.
            plane = jnp.where(masks[l - 1], tvals[l * num_heads + h], plane)
        out_ref[h] = plane.astype(out_ref.dtype)                   # full-lane store


def _tensorcores_per_chip():
    """Heuristic: v7x exposes 2 TensorCores per chip; v5e/v6e have 1."""
    try:
        kind = jax.devices()[0].device_kind.lower()
    except Exception:
        return 1
    return 2 if "v7" in kind else 1


def _vmem_budget_bytes():
    """~1/3 of this generation's per-core VMEM (64 MiB on v7x, 128 MiB on v5e/v6e)."""
    try:
        cap = getattr(pltpu.get_tpu_info(), "vmem_capacity_bytes", None)
        if cap:
            return max(8 << 20, int(cap) // 3)
    except Exception:
        pass
    return 24 << 20                                   # conservative fallback


def _pick_row_tile(N, num_heads, clamp_max, out_bytes, *,
                   vmem_budget_bytes, min_steps, max_rows=512):
    """Largest row tile (dtype-aligned, dividing N) whose double-buffered blocks
    plus in-kernel temporaries fit the VMEM budget, preferring >= `min_steps`
    grid steps (>= 2 per TensorCore on dual-TC chips) while keeping the output
    block >= ~1 MiB so the ~0.35 us/step overhead stays negligible."""
    sub = max(8, 32 // out_bytes)          # 8-row quantum for f32 output, 16 for bf16
    cands = [t for t in range(sub, min(N, max_rows) + 1, sub) if N % t == 0]
    if not cands:
        return N                           # tiny / odd N: one full-array block

    def block_bytes(t):
        dist = 2 * t * N * 4                             # double-buffered input block
        out = 2 * num_heads * t * N * out_bytes          # double-buffered output block
        tmp = (clamp_max + 2) * t * N * 4                # hoisted masks + d + live plane
        return dist + out + tmp

    fit = [t for t in cands if block_bytes(t) <= vmem_budget_bytes]
    if not fit:
        return cands[0]
    big = [t for t in fit
           if N // t >= min_steps and num_heads * t * N * out_bytes >= (1 << 20)]
    if big:
        return max(big)
    pref = [t for t in fit if N // t >= min_steps]
    if pref:
        return max(pref)
    pref2 = [t for t in fit if N // t >= 2]
    return max(pref2) if pref2 else max(fit)


def spatial_encoding(shortest_distances, bias_weight, max_shortest_path_len, *,
                     max_path_len, num_heads, row_tile=None, head_major=True,
                     out_dtype=jnp.float32):
    """Pallas SpatialEncoding.

    bias_weight: ((max_path_len+1)*num_heads, 1), i.e. nn.Embedding(...).weight.
    max_shortest_path_len must be a static Python/NumPy scalar (it selects the
    clamp bound at trace time).

    head_major=True  (default, fast path): returns lane-dense (num_heads, N, N)
                     planes -- the layout added to (H, N, N) attention scores.
    head_major=False: returns the module's exact (N, N, num_heads) layout
                     (costs one extra HBM read+write for the transpose).
    """
    N = shortest_distances.shape[0]
    L = max_path_len + 1
    H = num_heads
    clamp_max = min(max_path_len, int(max_shortest_path_len))   # static scalar

    # Glue: flatten the embedding weight [(L*H), 1] -> [L*H]; entry l*H + h is
    # exactly weight[l*H + h, 0], matching the PyTorch index reshape.
    table = bias_weight.reshape(L * H).astype(jnp.float32)

    out_bytes = np.dtype(out_dtype).itemsize
    if row_tile is None:
        TN = _pick_row_tile(
            N, H, clamp_max, out_bytes,
            vmem_budget_bytes=_vmem_budget_bytes(),
            min_steps=8 if _tensorcores_per_chip() >= 2 else 4)
    else:
        TN = row_tile
    assert N % TN == 0, "row tile must divide N"

    # VMEM limit = actual block footprint (+ temporaries) + headroom.
    dist_blk = 2 * TN * N * 4
    out_blk = 2 * H * TN * N * out_bytes
    tmp_blk = (clamp_max + 2) * TN * N * 4
    vmem_limit = int(min(dist_blk + out_blk + tmp_blk + (8 << 20), 64 << 20))

    kernel = partial(spatial_encoding_kernel, clamp_max=clamp_max, num_heads=H)
    out_hnn = pl.pallas_call(
        kernel,
        out_shape=jax.ShapeDtypeStruct((H, N, N), out_dtype),
        grid=(N // TN,),
        in_specs=[
            # Tiny table: whole array in SMEM, scalar reads, no per-step DMA.
            pl.BlockSpec(memory_space=pltpu.MemorySpace.SMEM),
            # Distance row-block.
            pl.BlockSpec((TN, N), lambda i: (i, 0)),
        ],
        # Lane-dense per-head planes: full 128-lane stores, no H-wide masking.
        out_specs=pl.BlockSpec((H, TN, N), lambda i: (0, i, 0)),
        compiler_params=pltpu.CompilerParams(
            dimension_semantics=("parallel",),
            vmem_limit_bytes=vmem_limit),
        cost_estimate=pl.CostEstimate(
            flops=0, transcendentals=0,
            bytes_accessed=N * N * 4 + H * N * N * out_bytes + L * H * 4),
    )(table, shortest_distances.astype(jnp.int32))

    if head_major:
        return out_hnn                              # (H, N, N), lane-dense
    # Module-compatible (N, N, num_heads) layout.  NOTE: this XLA transpose
    # re-reads + re-writes the whole output in HBM into a lane-masked layout;
    # prefer head_major=True (or fuse the bias add into the attention kernel).
    return jnp.transpose(out_hnn, (1, 2, 0))


if __name__ == "__main__":
    # Small, deterministic example consistent with the module's forward().
    max_path_len = 5
    num_heads = 4
    N = 16
    max_shortest_path_len = 7   # > max_path_len, exercises the min(...) clamp

    key = jax.random.PRNGKey(0)
    k_w, k_d = jax.random.split(key)

    # nn.Embedding((max_path_len+1)*num_heads, 1) weight, init ~ N(0, 1).
    bias_weight = jax.random.normal(
        k_w, ((max_path_len + 1) * num_heads, 1), dtype=jnp.float32)

    # Shortest distances between node pairs (includes values past the clamp).
    shortest_distances = jax.random.randint(
        k_d, (N, N), minval=0, maxval=max_shortest_path_len + 3, dtype=jnp.int32)

    # Pure-JAX reference (mirrors the PyTorch forward exactly).
    clamp_max = min(max_path_len, max_shortest_path_len)
    tbl = bias_weight.reshape(max_path_len + 1, num_heads)
    ref_nnh = tbl[jnp.clip(shortest_distances, 0, clamp_max)]     # (N, N, H)
    ref_hnn = jnp.transpose(ref_nnh, (2, 0, 1))                   # (H, N, N)

    # 1) Default fast path: head-major lane-dense planes.
    out_hnn = jax.block_until_ready(spatial_encoding(
        shortest_distances, bias_weight, max_shortest_path_len,
        max_path_len=max_path_len, num_heads=num_heads))
    assert out_hnn.shape == (num_heads, N, N)
    assert jnp.allclose(out_hnn, ref_hnn, atol=1e-6), "head-major mismatch"

    # 2) Module-compatible (N, N, num_heads) layout -- exact PyTorch semantics.
    out_nnh = jax.block_until_ready(spatial_encoding(
        shortest_distances, bias_weight, max_shortest_path_len,
        max_path_len=max_path_len, num_heads=num_heads, head_major=False))
    assert out_nnh.shape == (N, N, num_heads)
    assert jnp.allclose(out_nnh, ref_nnh, atol=1e-6), "module-layout mismatch"

    # 3) bf16 output option (halves HBM writeback; looser tolerance).
    out_bf16 = jax.block_until_ready(spatial_encoding(
        shortest_distances, bias_weight, max_shortest_path_len,
        max_path_len=max_path_len, num_heads=num_heads, out_dtype=jnp.bfloat16))
    assert out_bf16.dtype == jnp.bfloat16
    assert jnp.allclose(out_bf16.astype(jnp.float32), ref_hnn,
                        atol=2e-2, rtol=2e-2), "bf16 mismatch"

    print("KERNEL_OK")
</pallas_src>

<mosaic_0001>
module attributes {stable_mosaic.version = 11 : i64} {
  func.func @spatial_encoding_kernel(%arg0: i32, %arg1: memref<24xf32, #tpu.memory_space<smem>>, %arg2: memref<8x16xi32, #tpu.memory_space<vmem>>, %arg3: memref<4x8x16xf32, #tpu.memory_space<vmem>>) attributes {dimension_semantics = [#tpu.dimension_semantics<parallel>], iteration_bounds = array<i64: 2>, scalar_prefetch = 0 : i64, scratch_operands = 0 : i64, tpu.core_type = #tpu.core_type<tc>, window_params = [{transform_indices = @transform_0, window_bounds = array<i64: 24>}, {transform_indices = @transform_1, window_bounds = array<i64: 8, 16>}, {transform_indices = @transform_2, window_bounds = array<i64: 4, 8, 16>}]} {
    %c0 = arith.constant 0 : index
    %c0_0 = arith.constant 0 : index
    %0 = vector.load %arg2[%c0, %c0_0] : memref<8x16xi32, #tpu.memory_space<vmem>>, vector<8x16xi32>
    %c0_i32 = arith.constant 0 : i32
    %c5_i32 = arith.constant 5 : i32
    %1 = vector.broadcast %c0_i32 : i32 to vector<8x16xi32>
    %2 = arith.maxsi %1, %0 : vector<8x16xi32>
    %3 = vector.broadcast %c5_i32 : i32 to vector<8x16xi32>
    %4 = arith.minsi %3, %2 : vector<8x16xi32>
    %c0_1 = arith.constant 0 : index
    %5 = memref.load %arg1[%c0_1] : memref<24xf32, #tpu.memory_space<smem>>
    %c1 = arith.constant 1 : index
    %6 = memref.load %arg1[%c1] : memref<24xf32, #tpu.memory_space<smem>>
    %c2 = arith.constant 2 : index
    %7 = memref.load %arg1[%c2] : memref<24xf32, #tpu.memory_space<smem>>
    %c3 = arith.constant 3 : index
    %8 = memref.load %arg1[%c3] : memref<24xf32, #tpu.memory_space<smem>>
    %c4 = arith.constant 4 : index
    %9 = memref.load %arg1[%c4] : memref<24xf32, #tpu.memory_space<smem>>
    %c5 = arith.constant 5 : index
    %10 = memref.load %arg1[%c5] : memref<24xf32, #tpu.memory_space<smem>>
    %c6 = arith.constant 6 : index
    %11 = memref.load %arg1[%c6] : memref<24xf32, #tpu.memory_space<smem>>
    %c7 = arith.constant 7 : index
    %12 = memref.load %arg1[%c7] : memref<24xf32, #tpu.memory_space<smem>>
    %c8 = arith.constant 8 : index
    %13 = memref.load %arg1[%c8] : memref<24xf32, #tpu.memory_space<smem>>
    %c9 = arith.constant 9 : index
    %14 = memref.load %arg1[%c9] : memref<24xf32, #tpu.memory_space<smem>>
    %c10 = arith.constant 10 : index
    %15 = memref.load %arg1[%c10] : memref<24xf32, #tpu.memory_space<smem>>
    %c11 = arith.constant 11 : index
    %16 = memref.load %arg1[%c11] : memref<24xf32, #tpu.memory_space<smem>>
    %c12 = arith.constant 12 : index
    %17 = memref.load %arg1[%c12] : memref<24xf32, #tpu.memory_space<smem>>
    %c13 = arith.constant 13 : index
    %18 = memref.load %arg1[%c13] : memref<24xf32, #tpu.memory_space<smem>>
    %c14 = arith.constant 14 : index
    %19 = memref.load %arg1[%c14] : memref<24xf32, #tpu.memory_space<smem>>
    %c15 = arith.constant 15 : index
    %20 = memref.load %arg1[%c15] : memref<24xf32, #tpu.memory_space<smem>>
    %c16 = arith.constant 16 : index
    %21 = memref.load %arg1[%c16] : memref<24xf32, #tpu.memory_space<smem>>
    %c17 = arith.constant 17 : index
    %22 = memref.load %arg1[%c17] : memref<24xf32, #tpu.memory_space<smem>>
    %c18 = arith.constant 18 : index
    %23 = memref.load %arg1[%c18] : memref<24xf32, #tpu.memory_space<smem>>
    %c19 = arith.constant 19 : index
    %24 = memref.load %arg1[%c19] : memref<24xf32, #tpu.memory_space<smem>>
    %c20 = arith.constant 20 : index
    %25 = memref.load %arg1[%c20] : memref<24xf32, #tpu.memory_space<smem>>
    %c21 = arith.constant 21 : index
    %26 = memref.load %arg1[%c21] : memref<24xf32, #tpu.memory_space<smem>>
    %c22 = arith.constant 22 : index
    %27 = memref.load %arg1[%c22] : memref<24xf32, #tpu.memory_space<smem>>
    %c23 = arith.constant 23 : index
    %28 = memref.load %arg1[%c23] : memref<24xf32, #tpu.memory_space<smem>>
    %c1_i32 = arith.constant 1 : i32
    %29 = vector.broadcast %c1_i32 : i32 to vector<8x16xi32>
    %30 = arith.cmpi eq, %4, %29 : vector<8x16xi32>
    %c2_i32 = arith.constant 2 : i32
    %31 = vector.broadcast %c2_i32 : i32 to vector<8x16xi32>
    %32 = arith.cmpi eq, %4, %31 : vector<8x16xi32>
    %c3_i32 = arith.constant 3 : i32
    %33 = vector.broadcast %c3_i32 : i32 to vector<8x16xi32>
    %34 = arith.cmpi eq, %4, %33 : vector<8x16xi32>
    %c4_i32 = arith.constant 4 : i32
    %35 = vector.broadcast %c4_i32 : i32 to vector<8x16xi32>
    %36 = arith.cmpi eq, %4, %35 : vector<8x16xi32>
    %c5_i32_2 = arith.constant 5 : i32
    %37 = vector.broadcast %c5_i32_2 : i32 to vector<8x16xi32>
    %38 = arith.cmpi eq, %4, %37 : vector<8x16xi32>
    %39 = vector.broadcast %5 : f32 to vector<8x16xf32>
    %40 = vector.broadcast %9 : f32 to vector<8x16xf32>
    %41 = arith.select %30, %40, %39 : vector<8x16xi1>, vector<8x16xf32>
    %42 = vector.broadcast %13 : f32 to vector<8x16xf32>
    %43 = arith.select %32, %42, %41 : vector<8x16xi1>, vector<8x16xf32>
    %44 = vector.broadcast %17 : f32 to vector<8x16xf32>
    %45 = arith.select %34, %44, %43 : vector<8x16xi1>, vector<8x16xf32>
    %46 = vector.broadcast %21 : f32 to vector<8x16xf32>
    %47 = arith.select %36, %46, %45 : vector<8x16xi1>, vector<8x16xf32>
    %48 = vector.broadcast %25 : f32 to vector<8x16xf32>
    %49 = arith.select %38, %48, %47 : vector<8x16xi1>, vector<8x16xf32>
    %c0_3 = arith.constant 0 : index
    %c0_4 = arith.constant 0 : index
    %c0_5 = arith.constant 0 : index
    %50 = vector.load %arg3[%c0_3, %c0_4, %c0_5] : memref<4x8x16xf32, #tpu.memory_space<vmem>>, vector<1x8x16xf32>
    %51 = vector.shape_cast %50 : vector<1x8x16xf32> to vector<8x16xf32>
    %52 = vector.shape_cast %49 : vector<8x16xf32> to vector<1x8x16xf32>
    tpu.vector_store %arg3[%c0_3, %c0_4, %c0_5], %52 {strides = array<i32>} : memref<4x8x16xf32, #tpu.memory_space<vmem>>, vector<1x8x16xf32>,
    %53 = vector.broadcast %6 : f32 to vector<8x16xf32>
    %54 = vector.broadcast %10 : f32 to vector<8x16xf32>
    %55 = arith.select %30, %54, %53 : vector<8x16xi1>, vector<8x16xf32>
    %56 = vector.broadcast %14 : f32 to vector<8x16xf32>
    %57 = arith.select %32, %56, %55 : vector<8x16xi1>, vector<8x16xf32>
    %58 = vector.broadcast %18 : f32 to vector<8x16xf32>
    %59 = arith.select %34, %58, %57 : vector<8x16xi1>, vector<8x16xf32>
    %60 = vector.broadcast %22 : f32 to vector<8x16xf32>
    %61 = arith.select %36, %60, %59 : vector<8x16xi1>, vector<8x16xf32>
    %62 = vector.broadcast %26 : f32 to vector<8x16xf32>
    %63 = arith.select %38, %62, %61 : vector<8x16xi1>, vector<8x16xf32>
    %c1_6 = arith.constant 1 : index
    %c0_7 = arith.constant 0 : index
    %c0_8 = arith.constant 0 : index
    %64 = vector.load %arg3[%c1_6, %c0_7, %c0_8] : memref<4x8x16xf32, #tpu.memory_space<vmem>>, vector<1x8x16xf32>
    %65 = vector.shape_cast %64 : vector<1x8x16xf32> to vector<8x16xf32>
    %66 = vector.shape_cast %63 : vector<8x16xf32> to vector<1x8x16xf32>
    tpu.vector_store %arg3[%c1_6, %c0_7, %c0_8], %66 {strides = array<i32>} : memref<4x8x16xf32, #tpu.memory_space<vmem>>, vector<1x8x16xf32>,
    %67 = vector.broadcast %7 : f32 to vector<8x16xf32>
    %68 = vector.broadcast %11 : f32 to vector<8x16xf32>
    %69 = arith.select %30, %68, %67 : vector<8x16xi1>, vector<8x16xf32>
    %70 = vector.broadcast %15 : f32 to vector<8x16xf32>
    %71 = arith.select %32, %70, %69 : vector<8x16xi1>, vector<8x16xf32>
    %72 = vector.broadcast %19 : f32 to vector<8x16xf32>
    %73 = arith.select %34, %72, %71 : vector<8x16xi1>, vector<8x16xf32>
    %74 = vector.broadcast %23 : f32 to vector<8x16xf32>
    %75 = arith.select %36, %74, %73 : vector<8x16xi1>, vector<8x16xf32>
    %76 = vector.broadcast %27 : f32 to vector<8x16xf32>
    %77 = arith.select %38, %76, %75 : vector<8x16xi1>, vector<8x16xf32>
    %c2_9 = arith.constant 2 : index
    %c0_10 = arith.constant 0 : index
    %c0_11 = arith.constant 0 : index
    %78 = vector.load %arg3[%c2_9, %c0_10, %c0_11] : memref<4x8x16xf32, #tpu.memory_space<vmem>>, vector<1x8x16xf32>
    %79 = vector.shape_cast %78 : vector<1x8x16xf32> to vector<8x16xf32>
    %80 = vector.shape_cast %77 : vector<8x16xf32> to vector<1x8x16xf32>
    tpu.vector_store %arg3[%c2_9, %c0_10, %c0_11], %80 {strides = array<i32>} : memref<4x8x16xf32, #tpu.memory_space<vmem>>, vector<1x8x16xf32>,
    %81 = vector.broadcast %8 : f32 to vector<8x16xf32>
    %82 = vector.broadcast %12 : f32 to vector<8x16xf32>
    %83 = arith.select %30, %82, %81 : vector<8x16xi1>, vector<8x16xf32>
    %84 = vector.broadcast %16 : f32 to vector<8x16xf32>
    %85 = arith.select %32, %84, %83 : vector<8x16xi1>, vector<8x16xf32>
    %86 = vector.broadcast %20 : f32 to vector<8x16xf32>
    %87 = arith.select %34, %86, %85 : vector<8x16xi1>, vector<8x16xf32>
    %88 = vector.broadcast %24 : f32 to vector<8x16xf32>
    %89 = arith.select %36, %88, %87 : vector<8x16xi1>, vector<8x16xf32>
    %90 = vector.broadcast %28 : f32 to vector<8x16xf32>
    %91 = arith.select %38, %90, %89 : vector<8x16xi1>, vector<8x16xf32>
    %c3_12 = arith.constant 3 : index
    %c0_13 = arith.constant 0 : index
    %c0_14 = arith.constant 0 : index
    %92 = vector.load %arg3[%c3_12, %c0_13, %c0_14] : memref<4x8x16xf32, #tpu.memory_space<vmem>>, vector<1x8x16xf32>
    %93 = vector.shape_cast %92 : vector<1x8x16xf32> to vector<8x16xf32>
    %94 = vector.shape_cast %91 : vector<8x16xf32> to vector<1x8x16xf32>
    tpu.vector_store %arg3[%c3_12, %c0_13, %c0_14], %94 {strides = array<i32>} : memref<4x8x16xf32, #tpu.memory_space<vmem>>, vector<1x8x16xf32>,
    return
  }
  func.func @transform_0(%arg0: i32) -> i32 {
    %c0_i32 = arith.constant 0 : i32
    %c0_i32_0 = arith.constant 0 : i32
    return %c0_i32 : i32
  }
  func.func @transform_1(%arg0: i32) -> (i32, i32) {
    %c0_i32 = arith.constant 0 : i32
    %c0_i32_0 = arith.constant 0 : i32
    return %arg0, %c0_i32 : i32, i32
  }
  func.func @transform_2(%arg0: i32) -> (i32, i32, i32) {
    %c0_i32 = arith.constant 0 : i32
    %c0_i32_0 = arith.constant 0 : i32
    %c0_i32_1 = arith.constant 0 : i32
    return %c0_i32, %arg0, %c0_i32_0 : i32, i32, i32
  }
}

</mosaic_0001>

<llo_original>
// kernel: tpu_custom_call.1
$region0: #{tpu_custom_call.1}
  #allocation0 [shape = 'u32[]', space=smem, size = 0x4, offset = 0x4, fixed_abs, tag = 'smem constant byte address 0x4 - core index']
  #allocation1 [shape = 'u32[144,128]{1,0:T(1,128)}', space=vmem, size = 0x12000, scoped, tag = 'internal scratch']
  %s0 = inlined_call_operand.hbm [shape: f32[24], index: 0, kind: input, shape index: {}]
  %s1 = inlined_call_operand.hbm [shape: s32[16,16], index: 1, kind: input, shape index: {}]
  %s2 = inlined_call_operand.hbm [shape: f32[4,16,16], index: 2, kind: output, shape index: {}]
  %s3 = sld [smem:[#allocation0]]
  $region49: #{tpu_custom_call.1} parent=0
    _
  %s5 = ssub.s32 1, %s3
  %s6 = scalar_select 0, %s5, %s3
  $region1: #{tpu_custom_call.1} parent=0
    #allocation2 [shape = 'u8[512]{0}', space=smem, size = 0x200, scoped, tag = 'input window, operand 0, single buffered']
    #allocation3 [shape = 's32[2]{0}', space=sflag, size = 0x8, scoped, tag = 'scoped memory for tpu_custom_call.1']
    #allocation4 [shape = 's32[2]{0}', space=sflag, size = 0x8, scoped, tag = 'scoped memory for tpu_custom_call.1']
    #allocation5 [shape = 's32[2]{0}', space=sflag, size = 0x8, scoped, tag = 'scoped memory for tpu_custom_call.1']
    #allocation6 [shape = 'u8[8192]{0}', space=vmem, size = 0x2000, scoped, tag = 'input window, operand 1']
    #allocation7 [shape = 'u8[32768]{0}', space=vmem, size = 0x8000, scoped, tag = 'output window, operand 0']
    %7 = vsyncpa [#allocation5], 0
    %8 = vsyncpa [#allocation3], 0
    %s9 = scalar_lea.sflag [#allocation3], 1
    %10 = vsyncpa %s9, 0
    %11 = vsyncpa [#allocation4], 0
    %s12 = scalar_lea.sflag [#allocation4], 1
    %13 = vsyncpa %s12, 0
    loop: start=0, step=1, limit=4
    $region2: #{tpu_custom_call.1} parent=1 // loop_pre_header
      _
    $region3: #{tpu_custom_call.1} parent=1 // loop_header
      %s15 = sphi 0, %s19
      %p16 = scmp.ge.s32.totalorder %s15, 4
      %s23 = sphi 0, %s23
      %s25 = sphi 0, %s23
      %s26 = sphi 0, %s25
      %s40 = sphi 0, %s26
      %s46 = sphi 0, %s48
      %s49 = sphi 0, %s46
      %s50 = sphi 0, %s49
      %s66 = sphi 0, %s50
      %s72 = sphi 0, %s74
      %s75 = sphi 0, %s72
      %s76 = sphi 0, %s75
      %s92 = sphi 0, %s76
    $region4: #{tpu_custom_call.1} parent=1 // loop_header_branch
      %18 = sbr.rel (%p16) target = $region8
    $region5: #{tpu_custom_call.1} parent=1 // loop_body
      %s20 = ssub.s32 %s15, 1
      %s21 = ssub.s32 %s15, 2
      %s22 = sadd.s32 %s15, 1
      %s24 = sadd.s32 %s23, 1
      %p27 = scmp.eq.s32.totalorder %s15, 1
      %p28 = scmp.ne.s32.totalorder %s23, %s25
      %p29 = scmp.eq.s32.totalorder %s15, 0
      %p30 = por %p28, %p29
      %p31 = scmp.ne.s32.totalorder %s23, %s25
      %p32 = scmp.eq.s32.totalorder %s20, 1
      %p33 = por %p31, %p32
      %p34 = scmp.ne.s32.totalorder %s25, %s26
      %p35 = scmp.eq.s32.totalorder %s20, 0
      %p36 = por %p34, %p35
      %p37 = scmp.ne.s32.totalorder %s25, %s26
      %p38 = scmp.eq.s32.totalorder %s21, 1
      %p39 = por %p37, %p38
      %p41 = scmp.ne.s32.totalorder %s26, %s40
      %p42 = scmp.eq.s32.totalorder %s21, 0
      %p43 = por %p41, %p42
      %s44 = ssub.s32 %s15, %s22
      %p45 = scmp.eq.s32.totalorder %s44, 0
      %s47 = sadd.s32 %s46, 1
      %s48 = scalar_select %p45, %s46, %s47
      %p51 = pneg %p45
      %p52 = scmp.eq.s32.totalorder %s15, 1
      %p53 = por %p51, %p52
      %p54 = scmp.ne.s32.totalorder %s46, %s49
      %p55 = scmp.eq.s32.totalorder %s15, 0
      %p56 = por %p54, %p55
      %p57 = scmp.ne.s32.totalorder %s46, %s49
      %p58 = scmp.eq.s32.totalorder %s20, 1
      %p59 = por %p57, %p58
      %p60 = scmp.ne.s32.totalorder %s49, %s50
      %p61 = scmp.eq.s32.totalorder %s20, 0
      %p62 = por %p60, %p61
      %p63 = scmp.ne.s32.totalorder %s49, %s50
      %p64 = scmp.eq.s32.totalorder %s21, 1
      %p65 = por %p63, %p64
      %p67 = scmp.ne.s32.totalorder %s50, %s66
      %p68 = scmp.eq.s32.totalorder %s21, 0
      %p69 = por %p67, %p68
      %s70 = ssub.s32 %s15, %s22
      %p71 = scmp.eq.s32.totalorder %s70, 0
      %s73 = sadd.s32 %s72, 1
      %s74 = scalar_select %p71, %s72, %s73
      %p77 = pneg %p71
      %p78 = scmp.eq.s32.totalorder %s15, 1
      %p79 = por %p77, %p78
      %p80 = scmp.ne.s32.totalorder %s72, %s75
      %p81 = scmp.eq.s32.totalorder %s15, 0
      %p82 = por %p80, %p81
      %p83 = scmp.ne.s32.totalorder %s72, %s75
      %p84 = scmp.eq.s32.totalorder %s20, 1
      %p85 = por %p83, %p84
      %p86 = scmp.ne.s32.totalorder %s75, %s76
      %p87 = scmp.eq.s32.totalorder %s20, 0
      %p88 = por %p86, %p87
      %p89 = scmp.ne.s32.totalorder %s75, %s76
      %p90 = scmp.eq.s32.totalorder %s21, 1
      %p91 = por %p89, %p90
      %p93 = scmp.ne.s32.totalorder %s76, %s92
      %p94 = scmp.eq.s32.totalorder %s21, 0
      %p95 = por %p93, %p94
      %p96 = scmp.le.s32.totalorder 1, %s15
      %p97 = scmp.lt.s32.totalorder %s15, 3
      %p98 = pnand %p96, %p97
      %p99 = pneg %p98
      // Predicated region
      $region9: #{tpu_custom_call.1} parent=5 // pred_check
        _
      $region10: #{tpu_custom_call.1} parent=5 // pred_check_branch
        %101 = sbr.rel (%p98) target = $region12
      $region11: #{tpu_custom_call.1} parent=5 // pred_region
        %s102 = ssub.s32 %s15, 1
        // Predicated region
        $region13: #{tpu_custom_call.1} parent=11 // pred_check
          %p103 = pneg %p36
        $region14: #{tpu_custom_call.1} parent=11 // pred_check_branch
          %105 = sbr.rel (%p103) target = $region16
        $region15: #{tpu_custom_call.1} parent=11 // pred_region
          %s107 = ssub.s32 16, 16
          %108 = vsyncadd [#allocation5], %s107
          %111 = dma.hbm_to_smem %s0, 16, [#allocation2], [#allocation5]
        $region16: #{tpu_custom_call.1} parent=11 // pred_fallthru
          _
      $region12: #{tpu_custom_call.1} parent=5 // pred_fallthru
        _
      %p112 = scmp.lt.s32.totalorder %s15, 2
      // Predicated region
      $region17: #{tpu_custom_call.1} parent=5 // pred_check
        %p113 = pneg %p112
      $region18: #{tpu_custom_call.1} parent=5 // pred_check_branch
        %115 = sbr.rel (%p113) target = $region20
      $region19: #{tpu_custom_call.1} parent=5 // pred_region
        // Predicated region
        $region21: #{tpu_custom_call.1} parent=19 // pred_check
          %p116 = pneg %p56
        $region22: #{tpu_custom_call.1} parent=19 // pred_check_branch
          %118 = sbr.rel (%p116) target = $region24
        $region23: #{tpu_custom_call.1} parent=19 // pred_region
          %s119 = sand.u32 %s46, 1
          %s120 = scalar_lea.sflag [#allocation3], %s119
          %s121 = sand.u32 %s46, 1
          %s122 = smul.addr %s121, 8
          %s123 = scalar_lea.vmem [#allocation6], %s122
          %s125 = ssub.s32 128, 128
          %126 = vsyncadd %s120, %s125
          %s127 = smul.addr %s15, 128
          %s128 = scalar_lea.hbm %s1, %s127
          %s130 = sshll.u32 %s123, 4
          %s131 = int_to_ptr.vmem [resolvable:$true] %s130
          %133 = dma.hbm_to_vmem [thread:$0]  %s128, 128, %s131, %s120
        $region24: #{tpu_custom_call.1} parent=19 // pred_fallthru
          _
      $region20: #{tpu_custom_call.1} parent=5 // pred_fallthru
        _
      %p134 = scmp.le.s32.totalorder 1, %s15
      %p135 = scmp.lt.s32.totalorder %s15, 3
      %p136 = pnand %p134, %p135
      %p137 = pneg %p136
      // Predicated region
      $region25: #{tpu_custom_call.1} parent=5 // pred_check
        _
      $region26: #{tpu_custom_call.1} parent=5 // pred_check_branch
        %139 = sbr.rel (%p136) target = $region28
      $region27: #{tpu_custom_call.1} parent=5 // pred_region
        %s140 = ssub.s32 %s15, 1
        // Predicated region
        $region29: #{tpu_custom_call.1} parent=27 // pred_check
          %p141 = pneg %p36
        $region30: #{tpu_custom_call.1} parent=27 // pred_check_branch
          %143 = sbr.rel (%p141) target = $region32
        $region31: #{tpu_custom_call.1} parent=27 // pred_region
          %144 = dma.done [#allocation5], 16
        $region32: #{tpu_custom_call.1} parent=27 // pred_fallthru
          _
        %s145 = sand.u32 %s49, 1
        %s146 = scalar_lea.sflag [#allocation3], %s145
        %s147 = sand.u32 %s49, 1
        %s148 = smul.addr %s147, 8
        %s149 = scalar_lea.vmem [#allocation6], %s148
        // Predicated region
        $region33: #{tpu_custom_call.1} parent=27 // pred_check
          %p150 = pneg %p62
        $region34: #{tpu_custom_call.1} parent=27 // pred_check_branch
          %152 = sbr.rel (%p150) target = $region36
        $region35: #{tpu_custom_call.1} parent=27 // pred_region
          %153 = dma.done %s146, 128
        $region36: #{tpu_custom_call.1} parent=27 // pred_fallthru
          _
        %154 = sfence
        %p155 = pneg %p36
        %p156 = pneg %p33
        %s157 = sand.u32 %s49, 1
        %s158 = scalar_lea.sflag [#allocation3], %s157
        %s159 = sand.u32 %s49, 1
        %s160 = smul.addr %s159, 8
        %s161 = scalar_lea.vmem [#allocation6], %s160
        %p162 = pneg %p62
        %p163 = pneg %p59
        %p164 = pneg %p88
        %p165 = pneg %p85
        %s166 = sand.u32 %s75, 1
        %s167 = scalar_lea.sflag [#allocation4], %s166
        %s168 = sand.u32 %s75, 1
        %s169 = smul.addr %s168, 32
        %s170 = scalar_lea.vmem [#allocation7], %s169
        %v171 = vld [vmem:[%s149] sm:$0xff]
        %vm172 = vcmp.gt.s32.totalorder %v171, 0
        %v173 = vsel %vm172, %v171, 0
        %vm174 = vcmp.lt.s32.totalorder %v173, 5
        %v175 = vsel %vm174, %v173, 5
        %s176 = sld [smem:[#allocation2]]
        %s177 = sld [smem:[#allocation2 + $0x1]]
        %s178 = sld [smem:[#allocation2 + $0x2]]
        %s179 = sld [smem:[#allocation2 + $0x3]]
        %s180 = sld [smem:[#allocation2 + $0x4]]
        %s181 = sld [smem:[#allocation2 + $0x5]]
        %s182 = sld [smem:[#allocation2 + $0x6]]
        %s183 = sld [smem:[#allocation2 + $0x7]]
        %s184 = sld [smem:[#allocation2 + $0x8]]
        %s185 = sld [smem:[#allocation2 + $0x9]]
        %s186 = sld [smem:[#allocation2 + $0xa]]
        %s187 = sld [smem:[#allocation2 + $0xb]]
        %s188 = sld [smem:[#allocation2 + $0xc]]
        %s189 = sld [smem:[#allocation2 + $0xd]]
        %s190 = sld [smem:[#allocation2 + $0xe]]
        %s191 = sld [smem:[#allocation2 + $0xf]]
        %s192 = sld [smem:[#allocation2 + $0x10]]
        %s193 = sld [smem:[#allocation2 + $0x11]]
        %s194 = sld [smem:[#allocation2 + $0x12]]
        %s195 = sld [smem:[#allocation2 + $0x13]]
        %s196 = sld [smem:[#allocation2 + $0x14]]
        %s197 = sld [smem:[#allocation2 + $0x15]]
        %s198 = sld [smem:[#allocation2 + $0x16]]
        %s199 = sld [smem:[#allocation2 + $0x17]]
        %vm200 = vcmp.eq.s32.totalorder %v175, 1
        %vm201 = vcmp.eq.s32.totalorder %v175, 2
        %vm202 = vcmp.eq.s32.totalorder %v175, 3
        %vm203 = vcmp.eq.s32.totalorder %v175, 4
        %vm204 = vcmp.eq.s32.totalorder %v175, 5
        %v205 = vstv %s176
        %v206 = vstv %s180
        %v207 = vsel %vm200, %v206, %v205
        %v208 = vstv %s184
        %v209 = vsel %vm201, %v208, %v207
        %v210 = vstv %s188
        %v211 = vsel %vm202, %v210, %v209
        %v212 = vstv %s192
        %v213 = vsel %vm203, %v212, %v211
        %v214 = vstv %s196
        %v215 = vsel %vm204, %v214, %v213
        %vm216 = vcmask 130048
        %217 = vst.msk [vmem:[%s170] sm:$0xff] %vm216, %v215
        %v218 = vstv %s177
        %v219 = vstv %s181
        %v220 = vsel %vm200, %v219, %v218
        %v221 = vstv %s185
        %v222 = vsel %vm201, %v221, %v220
        %v223 = vstv %s189
        %v224 = vsel %vm202, %v223, %v222
        %v225 = vstv %s193
        %v226 = vsel %vm203, %v225, %v224
        %v227 = vstv %s197
        %v228 = vsel %vm204, %v227, %v226
        %s229 = scalar_lea.vmem %s170, 8 [#allocation7]
        %230 = vst.msk [vmem:[%s229] sm:$0xff] %vm216, %v228
        %v231 = vstv %s178
        %v232 = vstv %s182
        %v233 = vsel %vm200, %v232, %v231
        %v234 = vstv %s186
        %v235 = vsel %vm201, %v234, %v233
        %v236 = vstv %s190
        %v237 = vsel %vm202, %v236, %v235
        %v238 = vstv %s194
        %v239 = vsel %vm203, %v238, %v237
        %v240 = vstv %s198
        %v241 = vsel %vm204, %v240, %v239
        %s242 = scalar_lea.vmem %s170, 16 [#allocation7]
        %243 = vst.msk [vmem:[%s242] sm:$0xff] %vm216, %v241
        %v244 = vstv %s179
        %v245 = vstv %s183
        %v246 = vsel %vm200, %v245, %v244
        %v247 = vstv %s187
        %v248 = vsel %vm201, %v247, %v246
        %v249 = vstv %s191
        %v250 = vsel %vm202, %v249, %v248
        %v251 = vstv %s195
        %v252 = vsel %vm203, %v251, %v250
        %v253 = vstv %s199
        %v254 = vsel %vm204, %v253, %v252
        %s255 = scalar_lea.vmem %s170, 24 [#allocation7]
        %256 = vst.msk [vmem:[%s255] sm:$0xff] %vm216, %v254
        %s257 = sand.u32 %s75, 1
        %s258 = scalar_lea.sflag [#allocation4], %s257
        %s259 = sand.u32 %s75, 1
        %s260 = smul.addr %s259, 32
        %s261 = scalar_lea.vmem [#allocation7], %s260
        // Predicated region
        $region37: #{tpu_custom_call.1} parent=27 // pred_check
          %p262 = pneg %p85
        $region38: #{tpu_custom_call.1} parent=27 // pred_check_branch
          %264 = sbr.rel (%p262) target = $region40
        $region39: #{tpu_custom_call.1} parent=27 // pred_region
          %s266 = ssub.s32 512, 512
          %267 = vsyncadd %s258, %s266
          %s268 = smul.addr %s20, 128
          %s269 = scalar_lea.hbm %s2, %s268
          %s270 = sshll.u32 %s261, 4
          %s271 = int_to_ptr.vmem [resolvable:$true] %s270
          %276 = dma.vmem_to_hbm [thread:$0]  %s271, 512, %s269, %s258, 128, 256, 8
        $region40: #{tpu_custom_call.1} parent=27 // pred_fallthru
          _
      $region28: #{tpu_custom_call.1} parent=5 // pred_fallthru
        _
      %p277 = scmp.le.s32.totalorder 2, %s15
      // Predicated region
      $region41: #{tpu_custom_call.1} parent=5 // pred_check
        %p278 = pneg %p277
      $region42: #{tpu_custom_call.1} parent=5 // pred_check_branch
        %280 = sbr.rel (%p278) target = $region44
      $region43: #{tpu_custom_call.1} parent=5 // pred_region
        %s281 = ssub.s32 %s15, 2
        // Predicated region
        $region45: #{tpu_custom_call.1} parent=43 // pred_check
          %p282 = pneg %p91
        $region46: #{tpu_custom_call.1} parent=43 // pred_check_branch
          %284 = sbr.rel (%p282) target = $region48
        $region47: #{tpu_custom_call.1} parent=43 // pred_region
          %s285 = sand.u32 %s76, 1
          %s286 = scalar_lea.sflag [#allocation4], %s285
          %s287 = sand.u32 %s76, 1
          %s288 = smul.addr %s287, 32
          %s289 = scalar_lea.vmem [#allocation7], %s288
          %290 = dma.done %s286, 512
        $region48: #{tpu_custom_call.1} parent=43 // pred_fallthru
          _
      $region44: #{tpu_custom_call.1} parent=5 // pred_fallthru
        _
    $region6: #{tpu_custom_call.1} parent=1 // loop_footer
      %s19 = sadd.s32 1, %s15
    $region7: #{tpu_custom_call.1} parent=1 // loop_footer_branch
      %14 = sbr.rel target = $region3
    $region8: #{tpu_custom_call.1} parent=1 // loop_exit
      _
    %291 = vsyncpa [#allocation3], 1
    %s292 = scalar_lea.sflag [#allocation3], 1
    %293 = vsyncpa %s292, 1
    %294 = vsyncpa [#allocation4], 1
    %s295 = scalar_lea.sflag [#allocation4], 1
    %296 = vsyncpa %s295, 1
    %297 = vsyncpa [#allocation5], 1
    %s298 = scalar_lea.sflag [#allocation5], 1
    %299 = vsyncpa %s298, 1

</llo_original>
